<compile_context>
chip_gen: v7x
topology: tpu7x:2x2x1
jax: 0.10.0
libtpu: 0.0.40
codegen_flags: <defaults>
</compile_context>

<pallas_src>
import numpy as np
import jax
import jax.numpy as jnp
from jax import lax
from jax.experimental import pallas as pl
from jax.experimental.pallas import tpu as pltpu

# ----------------------------- configuration --------------------------------
B = 2
H_IN, W_IN = 16, 16
IN_CH, OUT_CH = 1, 1
FEATURE_MAPS = 16
LEVELS = 3
BOT = 2
EPS_NORM = 1e-5
LANE = 128


def _pad_lanes(n):
    return max(LANE, ((n + LANE - 1) // LANE) * LANE)


N1 = B * 16 * 16                 # 512 (16x16)
N2 = _pad_lanes(B * 8 * 8)       # 128 (8x8)
N3 = _pad_lanes(B * 4 * 4)       # 128 (4x4, 32 logical lanes)
N4 = _pad_lanes(B * 2 * 2)       # 128 (2x2, 8 logical lanes)
C3 = FEATURE_MAPS // 2 ** (LEVELS - 1)                 # 4
HW3 = (H_IN // 2 ** LEVELS) * (W_IN // 2 ** LEVELS)    # 4


# ----------------------------- static slab layouts ---------------------------
def _aligned_layout(entries, align):
    offs, cur = {}, 0
    for name, rows in entries:
        offs[name] = cur
        cur += -(-rows // align) * align
    return offs, cur


CONV_SPECS = {          # name -> (cout, cin); conv3x3 weights, im2col layout
    "enc1a": (16, 1),  "enc1b": (16, 16),
    "enc2a": (8, 16),  "enc2b": (8, 8),
    "enc3a": (4, 8),   "enc3b": (4, 4),
    "dec1a": (8, 8),   "dec1b": (8, 8),
    "dec2a": (16, 16), "dec2b": (16, 16),
}
DECONV_SPECS = {"up1": (8, 4), "up2": (16, 8), "up3": (16, 16)}   # (cout, cin)

W_OFF, W_ROWS = _aligned_layout(
    [(n, co) for n, (co, _) in CONV_SPECS.items()]
    + [(n, 4 * co) for n, (co, _) in DECONV_SPECS.items()]
    + [("out", OUT_CH)], 16)
W_COLS = 144   # max 9*Cin

C128_OFF, C128_ROWS = _aligned_layout(
    [("pool1", N1), ("pool2", N2), ("pool3", N3),
     ("upsc1", 4 * N4), ("upsc2", 4 * N3)], 16)
C512_OFF, C512_ROWS = _aligned_layout([("upsc3", 4 * N2)], 16)

F512_OFF, F512_ROWS = _aligned_layout([("bmask16", B), ("mask16", 9)], 8)

FC_OFF, FC_ROWS = _aligned_layout(
    [("enc_w_lane", 2 * BOT * C3), ("dec_w_lane", C3 * BOT), ("dec_b_lane", C3),
     ("bmask2", B), ("bmask8", B), ("bmask4", B),
     ("gs_enc", 2 * BOT), ("gs_dec", C3),
     ("rep_enc", 2 * BOT * C3), ("rep_dec", C3 * BOT),
     ("mask8", 9), ("mask4", 9)], 8)

BT_OFF, BT_ROWS = _aligned_layout(
    [("bm16T", N1), ("bm8T", N2), ("bm4T", N3), ("bm2T", N4)], 8)

BC_OFF, BC_ROWS = _aligned_layout(
    [("up1_b", 8), ("up2_b", 16), ("up3_b", 16), ("out_b", OUT_CH),
     ("enc_fc_b", 2 * BOT)], 8)


# ------------------------------ parameter init -------------------------------
def init_params(key):
    """PyTorch-layout parameters of the BVAE."""
    def nrm(k, shape, scale=0.1):
        return scale * jax.random.normal(k, shape, dtype=jnp.float32)

    keys = iter(jax.random.split(key, 64))
    p = {}
    in_f = IN_CH
    for i in range(LEVELS):
        out_f = FEATURE_MAPS // 2 ** i
        p[f"enc_cb{i+1}"] = {
            "w1": nrm(next(keys), (out_f, in_f, 3, 3)), "b1": nrm(next(keys), (out_f,)),
            "w2": nrm(next(keys), (out_f, out_f, 3, 3)), "b2": nrm(next(keys), (out_f,)),
        }
        in_f = out_f
    flat = C3 * HW3
    p["enc_fc_w"] = nrm(next(keys), (2 * BOT, flat))
    p["enc_fc_b"] = nrm(next(keys), (2 * BOT,))
    p["dec_fc_w"] = nrm(next(keys), (flat, BOT))
    p["dec_fc_b"] = nrm(next(keys), (flat,))
    for i in range(LEVELS - 1):
        cin = FEATURE_MAPS // 2 ** (LEVELS - i - 1)
        cout = FEATURE_MAPS // 2 ** (LEVELS - i - 2)
        p[f"dec_up{i+1}"] = {"w": nrm(next(keys), (cin, cout, 2, 2)),
                             "b": nrm(next(keys), (cout,))}
        p[f"dec_cb{i+1}"] = {
            "w1": nrm(next(keys), (cout, cout, 3, 3)), "b1": nrm(next(keys), (cout,)),
            "w2": nrm(next(keys), (cout, cout, 3, 3)), "b2": nrm(next(keys), (cout,)),
        }
    p[f"dec_up{LEVELS}"] = {"w": nrm(next(keys), (FEATURE_MAPS, FEATURE_MAPS, 2, 2)),
                            "b": nrm(next(keys), (FEATURE_MAPS,))}
    p["out_w"] = nrm(next(keys), (OUT_CH, FEATURE_MAPS, 1, 1))
    p["out_b"] = nrm(next(keys), (OUT_CH,))
    return p


# --------------------- host-built constant 0/1 matrices ----------------------
def _conv_masks(h, w, n_pad):
    m = np.zeros((9, n_pad), np.float32)
    for k in range(9):
        di, dj = divmod(k, 3)
        for b in range(B):
            for i in range(h):
                for j in range(w):
                    if 0 <= i + di - 1 < h and 0 <= j + dj - 1 < w:
                        m[k, b * h * w + i * w + j] = 1.0
    return m


def _pool_select(h, w, n_in, n_out):
    ho, wo = h // 2, w // 2
    s = np.zeros((n_in, n_out), np.float32)
    for b in range(B):
        for i in range(ho):
            for j in range(wo):
                s[b * h * w + 2 * i * w + 2 * j, b * ho * wo + i * wo + j] = 1.0
    return s


def _up_scatter_tap(h_in, w_in, n_in, n_out, di, dj):
    """Input pixel (i,j) -> upsampled output (2i+di, 2j+dj); tap offset baked in."""
    ho, wo = 2 * h_in, 2 * w_in
    u = np.zeros((n_in, n_out), np.float32)
    for b in range(B):
        for i in range(h_in):
            for j in range(w_in):
                u[b * h_in * w_in + i * w_in + j,
                  b * ho * wo + (2 * i + di) * wo + (2 * j + dj)] = 1.0
    return u


def _batch_mask(hw, n_pad):
    m = np.zeros((B, n_pad), np.float32)
    for b in range(B):
        m[b, b * hw:(b + 1) * hw] = 1.0
    return m


def _conv_im2col(w):          # (Cout,Cin,3,3) -> (Cout, 9*Cin), col = (di*3+dj)*Cin + c
    w = np.asarray(w, np.float32)
    co, ci = w.shape[0], w.shape[1]
    return np.transpose(w, (0, 2, 3, 1)).reshape(co, 9 * ci)


def _deconv_stack(w):         # (Cin,Cout,2,2) -> (4*Cout, Cin), row = (di*2+dj)*Cout + o
    w = np.asarray(w, np.float32)
    ci, co = w.shape[0], w.shape[1]
    return np.transpose(w, (2, 3, 1, 0)).reshape(4 * co, ci)


def pack_kernel_inputs(params):
    """Pack PyTorch-layout params + constant 0/1 matrices into a few kernel slabs."""
    # bf16 weight slab (conv im2col, deconv stacked, 1x1 out conv)
    wslab = np.zeros((W_ROWS, W_COLS), np.float32)
    conv_src = {"enc1a": ("enc_cb1", "w1"), "enc1b": ("enc_cb1", "w2"),
                "enc2a": ("enc_cb2", "w1"), "enc2b": ("enc_cb2", "w2"),
                "enc3a": ("enc_cb3", "w1"), "enc3b": ("enc_cb3", "w2"),
                "dec1a": ("dec_cb1", "w1"), "dec1b": ("dec_cb1", "w2"),
                "dec2a": ("dec_cb2", "w1"), "dec2b": ("dec_cb2", "w2")}
    for name, (blk, key) in conv_src.items():
        m = _conv_im2col(params[blk][key])
        wslab[W_OFF[name]:W_OFF[name] + m.shape[0], :m.shape[1]] = m
    for i, name in enumerate(["up1", "up2", "up3"], start=1):
        m = _deconv_stack(params[f"dec_up{i}"]["w"])
        wslab[W_OFF[name]:W_OFF[name] + m.shape[0], :m.shape[1]] = m
    ow = np.asarray(params["out_w"], np.float32).reshape(OUT_CH, FEATURE_MAPS)
    wslab[W_OFF["out"]:W_OFF["out"] + OUT_CH, :FEATURE_MAPS] = ow

    # bf16 0/1 slab, 128 columns (pool compaction + deconv scatters at levels 4x4/8x8)
    c128 = np.zeros((C128_ROWS, 128), np.float32)
    c128[C128_OFF["pool1"]:C128_OFF["pool1"] + N1] = _pool_select(16, 16, N1, N2)
    c128[C128_OFF["pool2"]:C128_OFF["pool2"] + N2] = _pool_select(8, 8, N2, N3)
    c128[C128_OFF["pool3"]:C128_OFF["pool3"] + N3] = _pool_select(4, 4, N3, N4)
    for dd in range(4):
        di, dj = divmod(dd, 2)
        c128[C128_OFF["upsc1"] + dd * N4:C128_OFF["upsc1"] + (dd + 1) * N4] = \
            _up_scatter_tap(2, 2, N4, N3, di, dj)
        c128[C128_OFF["upsc2"] + dd * N3:C128_OFF["upsc2"] + (dd + 1) * N3] = \
            _up_scatter_tap(4, 4, N3, N2, di, dj)

    # bf16 0/1 slab, 512 columns (deconv scatter at 16x16 level)
    c512 = np.zeros((C512_ROWS, 512), np.float32)
    for dd in range(4):
        di, dj = divmod(dd, 2)
        c512[C512_OFF["upsc3"] + dd * N2:C512_OFF["upsc3"] + (dd + 1) * N2] = \
            _up_scatter_tap(8, 8, N2, N1, di, dj)

    # f32 slab, 512 columns (level-16 batch mask + boundary masks)
    f512 = np.zeros((F512_ROWS, 512), np.float32)
    f512[F512_OFF["bmask16"]:F512_OFF["bmask16"] + B] = _batch_mask(256, N1)
    f512[F512_OFF["mask16"]:F512_OFF["mask16"] + 9] = _conv_masks(16, 16, N1)

    # f32 misc slab, 128 columns (bottleneck FC lanes, batch masks, group-sum / rep, masks)
    fc = np.zeros((FC_ROWS, 128), np.float32)
    wenc = np.asarray(params["enc_fc_w"], np.float32)       # (4, 16), col = c*HW3 + s
    wdec = np.asarray(params["dec_fc_w"], np.float32)       # (16, 2)
    bdec = np.asarray(params["dec_fc_b"], np.float32)       # (16,)
    for b in range(B):
        for s in range(HW3):
            p = b * HW3 + s
            for o in range(2 * BOT):
                for c in range(C3):
                    fc[FC_OFF["enc_w_lane"] + o * C3 + c, p] = wenc[o, c * HW3 + s]
            for c in range(C3):
                for k in range(BOT):
                    fc[FC_OFF["dec_w_lane"] + c * BOT + k, p] = wdec[c * HW3 + s, k]
                fc[FC_OFF["dec_b_lane"] + c, p] = bdec[c * HW3 + s]
    fc[FC_OFF["bmask2"]:FC_OFF["bmask2"] + B] = _batch_mask(HW3, N4)
    fc[FC_OFF["bmask8"]:FC_OFF["bmask8"] + B] = _batch_mask(64, N2)
    fc[FC_OFF["bmask4"]:FC_OFF["bmask4"] + B] = _batch_mask(16, N3)
    for o in range(2 * BOT):
        fc[FC_OFF["gs_enc"] + o, o * C3:(o + 1) * C3] = 1.0
        for c in range(C3):
            fc[FC_OFF["rep_enc"] + o * C3 + c, c] = 1.0
    for c in range(C3):
        fc[FC_OFF["gs_dec"] + c, c * BOT:(c + 1) * BOT] = 1.0
        for k in range(BOT):
            fc[FC_OFF["rep_dec"] + c * BOT + k, k] = 1.0
    fc[FC_OFF["mask8"]:FC_OFF["mask8"] + 9] = _conv_masks(8, 8, N2)
    fc[FC_OFF["mask4"]:FC_OFF["mask4"] + 9] = _conv_masks(4, 4, N3)

    # f32 transposed batch masks (N, B) for the matmul-based InstanceNorm statistics
    bt = np.zeros((BT_ROWS, B), np.float32)
    for off, hw in ((BT_OFF["bm16T"], 256), (BT_OFF["bm8T"], 64),
                    (BT_OFF["bm4T"], 16), (BT_OFF["bm2T"], HW3)):
        for b in range(B):
            bt[off + b * hw:off + (b + 1) * hw, b] = 1.0

    # f32 bias column slab (deconv biases, 1x1-conv bias, encoder FC bias).
    # Conv3x3 biases are intentionally dropped: InstanceNorm(affine=False) cancels them.
    bc = np.zeros((BC_ROWS, 1), np.float32)
    bc[BC_OFF["up1_b"]:BC_OFF["up1_b"] + 8, 0] = np.asarray(params["dec_up1"]["b"], np.float32)
    bc[BC_OFF["up2_b"]:BC_OFF["up2_b"] + 16, 0] = np.asarray(params["dec_up2"]["b"], np.float32)
    bc[BC_OFF["up3_b"]:BC_OFF["up3_b"] + 16, 0] = np.asarray(params["dec_up3"]["b"], np.float32)
    bc[BC_OFF["out_b"], 0] = float(np.asarray(params["out_b"], np.float32)[0])
    bc[BC_OFF["enc_fc_b"]:BC_OFF["enc_fc_b"] + 2 * BOT, 0] = \
        np.asarray(params["enc_fc_b"], np.float32)

    return {
        "wslab": jnp.asarray(wslab, jnp.bfloat16),
        "c128": jnp.asarray(c128, jnp.bfloat16),
        "c512": jnp.asarray(c512, jnp.bfloat16),
        "f512": jnp.asarray(f512),
        "fc128": jnp.asarray(fc),
        "bT2": jnp.asarray(bt),
        "bcol": jnp.asarray(bc),
    }


# ----------------------- pltpu.roll direction probe --------------------------
def _roll_probe_kernel(x_ref, o_ref):
    o_ref[...] = pltpu.roll(x_ref[...], 1, axis=1)


def detect_roll_like_jnp():
    """Does pltpu.roll shift toward higher lane indices (jnp.roll semantics)?"""
    x = jnp.tile(jnp.arange(LANE, dtype=jnp.float32)[None, :], (8, 1))
    y = pl.pallas_call(_roll_probe_kernel,
                       out_shape=jax.ShapeDtypeStruct((8, LANE), jnp.float32))(x)
    return bool(y[0, 0] == float(LANE - 1))


# ------------------------------ fused forward --------------------------------
def make_forward(roll_like_jnp):
    def _roll_lanes(v, shift):
        """result[..., p] = v[..., (p - shift) mod N]  (== jnp.roll(v, shift, -1))."""
        n = v.shape[-1]
        s = shift % n
        if s == 0:
            return v
        amt = s if roll_like_jnp else n - s
        return pltpu.roll(v, amt, axis=v.ndim - 1)

    def bvae_kernel(x_ref, eps_ref, w_ref, c128_ref, c512_ref, fc_ref, f512_ref,
                    bt_ref, bc_ref, out_ref, stats_ref):

        def conv_in_relu(x, name, mask_ref, mask_off, w_sp, hw, bmask, bmaskT):
            """Conv2d(3x3, pad=1) -> InstanceNorm2d(affine=False) -> ReLU on a (C,N) slab.
            Conv bias omitted: it is exactly cancelled by the norm's mean subtraction."""
            cout, cin = CONV_SPECS[name]
            off = W_OFF[name]
            n = x.shape[-1]
            taps = []
            for k in range(9):
                di, dj = divmod(k, 3)
                delta = (di - 1) * w_sp + (dj - 1)
                xs = _roll_lanes(x, -delta)                      # xs[p] = x[p + delta]
                if k != 4:                                       # centre tap: no mask needed
                    xs = xs * mask_ref[mask_off + k:mask_off + k + 1, 0:n]
                taps.append(xs)
            if cin >= 8:
                # single im2col matmul: (cout, 9cin) @ (9cin, n); f32 concat keeps the
                # sublane concatenation tile-aligned, then one cast to bf16 for the MXU.
                stack = jnp.concatenate(taps, axis=0).astype(jnp.bfloat16)
                W = w_ref[off:off + cout, 0:9 * cin]
                y = jnp.dot(W, stack, preferred_element_type=jnp.float32)
            else:
                # tiny cin (1 or 4): per-tap accumulation (negligible cost)
                y = jnp.zeros((cout, n), jnp.float32)
                for k in range(9):
                    wk = w_ref[off:off + cout, k * cin:(k + 1) * cin]
                    if cin == 1:
                        y = y + wk.astype(jnp.float32) * taps[k]
                    else:
                        y = y + jnp.dot(wk, taps[k].astype(jnp.bfloat16),
                                        preferred_element_type=jnp.float32)
            # matmul-based per-(sample, channel) InstanceNorm (biased var, eps=1e-5)
            inv_hw = 1.0 / hw
            mean = jnp.dot(y, bmaskT, preferred_element_type=jnp.float32) * inv_hw
            cen = y - jnp.dot(mean, bmask, preferred_element_type=jnp.float32)
            var = jnp.dot(cen * cen, bmaskT, preferred_element_type=jnp.float32) * inv_hw
            istd = lax.rsqrt(var + EPS_NORM)
            ynorm = cen * jnp.dot(istd, bmask, preferred_element_type=jnp.float32)
            return jnp.maximum(ynorm, 0.0)       # pad lanes forced to 0 by the broadcast

        def maxpool(x, w_sp, pool_off, n_in):
            m = jnp.maximum(jnp.maximum(x, _roll_lanes(x, -1)),
                            jnp.maximum(_roll_lanes(x, -w_sp), _roll_lanes(x, -(w_sp + 1))))
            P = c128_ref[pool_off:pool_off + n_in, 0:128]
            return jnp.dot(m.astype(jnp.bfloat16), P, preferred_element_type=jnp.float32)

        def deconv(x, name, sc_ref, sc_off, n_in, n_out, b_off):
            """ConvTranspose2d(k=2,s=2): one stacked weight matmul + 4 baked-offset
            scatter matmuls (no lane rolls)."""
            cout, cin = DECONV_SPECS[name]
            Wst = w_ref[W_OFF[name]:W_OFF[name] + 4 * cout, 0:cin]
            Y = jnp.dot(Wst, x.astype(jnp.bfloat16), preferred_element_type=jnp.float32)
            out = jnp.zeros((cout, n_out), jnp.float32) + bc_ref[b_off:b_off + cout, :]
            for dd in range(4):
                S = sc_ref[sc_off + dd * n_in:sc_off + (dd + 1) * n_in, 0:n_out]
                out = out + jnp.dot(Y[dd * cout:(dd + 1) * cout, :].astype(jnp.bfloat16),
                                    S, preferred_element_type=jnp.float32)
            return out

        bm16 = f512_ref[F512_OFF["bmask16"]:F512_OFF["bmask16"] + B, :]
        bm8 = fc_ref[FC_OFF["bmask8"]:FC_OFF["bmask8"] + B, :]
        bm4 = fc_ref[FC_OFF["bmask4"]:FC_OFF["bmask4"] + B, :]
        bm2 = fc_ref[FC_OFF["bmask2"]:FC_OFF["bmask2"] + B, :]
        bm16T = bt_ref[BT_OFF["bm16T"]:BT_OFF["bm16T"] + N1, :]
        bm8T = bt_ref[BT_OFF["bm8T"]:BT_OFF["bm8T"] + N2, :]
        bm4T = bt_ref[BT_OFF["bm4T"]:BT_OFF["bm4T"] + N3, :]
        bm2T = bt_ref[BT_OFF["bm2T"]:BT_OFF["bm2T"] + N4, :]
        m16, m8, m4 = F512_OFF["mask16"], FC_OFF["mask8"], FC_OFF["mask4"]

        # ------------------------------- encoder -------------------------------
        h = x_ref[...]                                                      # (1, 512)
        h = conv_in_relu(h, "enc1a", f512_ref, m16, 16, 256, bm16, bm16T)
        h = conv_in_relu(h, "enc1b", f512_ref, m16, 16, 256, bm16, bm16T)
        h = maxpool(h, 16, C128_OFF["pool1"], N1)                           # (16, 128)
        h = conv_in_relu(h, "enc2a", fc_ref, m8, 8, 64, bm8, bm8T)
        h = conv_in_relu(h, "enc2b", fc_ref, m8, 8, 64, bm8, bm8T)
        h = maxpool(h, 8, C128_OFF["pool2"], N2)                            # (8, 128)
        h = conv_in_relu(h, "enc3a", fc_ref, m4, 4, 16, bm4, bm4T)
        h = conv_in_relu(h, "enc3b", fc_ref, m4, 4, 16, bm4, bm4T)
        h = maxpool(h, 4, C128_OFF["pool3"], N4)                            # (4, 128)

        # ---------------- bottleneck (fc -> reparametrise -> fc) ---------------
        wl = fc_ref[FC_OFF["enc_w_lane"]:FC_OFF["enc_w_lane"] + 2 * BOT * C3, :]   # (16,128)
        rep_e = fc_ref[FC_OFF["rep_enc"]:FC_OFF["rep_enc"] + 2 * BOT * C3, 0:C3]   # (16,4)
        gse = fc_ref[FC_OFF["gs_enc"]:FC_OFF["gs_enc"] + 2 * BOT, 0:2 * BOT * C3]  # (4,16)
        h_rep = jnp.dot(rep_e, h, preferred_element_type=jnp.float32)              # (16,128)
        partial = jnp.dot(wl * h_rep, bm2T, preferred_element_type=jnp.float32)    # (16,B)
        enc = jnp.dot(gse, partial, preferred_element_type=jnp.float32) \
            + bc_ref[BC_OFF["enc_fc_b"]:BC_OFF["enc_fc_b"] + 2 * BOT, :]           # (4,B)
        mu_t = enc[0:BOT, :]
        logvar_t = enc[BOT:2 * BOT, :]
        z_t = mu_t + jnp.exp(0.5 * logvar_t) * eps_ref[...]                        # (2,B)
        stats_ref[0:2 * BOT, :] = enc
        stats_ref[2 * BOT:3 * BOT, :] = z_t

        wdl = fc_ref[FC_OFF["dec_w_lane"]:FC_OFF["dec_w_lane"] + C3 * BOT, :]      # (8,128)
        rep_d = fc_ref[FC_OFF["rep_dec"]:FC_OFF["rep_dec"] + C3 * BOT, 0:BOT]      # (8,2)
        gsd = fc_ref[FC_OFF["gs_dec"]:FC_OFF["gs_dec"] + C3, 0:C3 * BOT]           # (4,8)
        z_lane = jnp.dot(z_t, bm2, preferred_element_type=jnp.float32)             # (2,128)
        z_rep = jnp.dot(rep_d, z_lane, preferred_element_type=jnp.float32)         # (8,128)
        d = jnp.dot(gsd, wdl * z_rep, preferred_element_type=jnp.float32) \
            + fc_ref[FC_OFF["dec_b_lane"]:FC_OFF["dec_b_lane"] + C3, :]            # (4,128)

        # ------------------------------- decoder -------------------------------
        d = deconv(d, "up1", c128_ref, C128_OFF["upsc1"], N4, N3, BC_OFF["up1_b"])  # (8,128)
        d = conv_in_relu(d, "dec1a", fc_ref, m4, 4, 16, bm4, bm4T)
        d = conv_in_relu(d, "dec1b", fc_ref, m4, 4, 16, bm4, bm4T)
        d = deconv(d, "up2", c128_ref, C128_OFF["upsc2"], N3, N2, BC_OFF["up2_b"])  # (16,128)
        d = conv_in_relu(d, "dec2a", fc_ref, m8, 8, 64, bm8, bm8T)
        d = conv_in_relu(d, "dec2b", fc_ref, m8, 8, 64, bm8, bm8T)
        d = deconv(d, "up3", c512_ref, C512_OFF["upsc3"], N2, N1, BC_OFF["up3_b"])  # (16,512)

        ow = w_ref[W_OFF["out"]:W_OFF["out"] + OUT_CH, 0:FEATURE_MAPS]              # (1,16)
        out_ref[...] = jnp.dot(ow, d.astype(jnp.bfloat16),
                               preferred_element_type=jnp.float32) \
            + bc_ref[BC_OFF["out_b"]:BC_OFF["out_b"] + OUT_CH, :]

    fused = pl.pallas_call(
        bvae_kernel,
        out_shape=(jax.ShapeDtypeStruct((OUT_CH, N1), jnp.float32),
                   jax.ShapeDtypeStruct((3 * BOT, B), jnp.float32)),
    )

    @jax.jit
    def forward(packed, x, eps):
        x_flat = jnp.transpose(x, (1, 0, 2, 3)).reshape(IN_CH, N1)
        eps_t = jnp.transpose(eps)
        out_flat, stats = fused(x_flat, eps_t, packed["wslab"], packed["c128"],
                                packed["c512"], packed["fc128"], packed["f512"],
                                packed["bT2"], packed["bcol"])
        out = jnp.transpose(out_flat.reshape(OUT_CH, B, H_IN, W_IN), (1, 0, 2, 3))
        mu = jnp.transpose(stats[0:BOT, :])
        logvar = jnp.transpose(stats[BOT:2 * BOT, :])
        z = jnp.transpose(stats[2 * BOT:3 * BOT, :])
        return out, mu, logvar, z

    return forward


# --------------------------- pure-JAX reference ------------------------------
def reference_forward(params, x, eps):
    prec = lax.Precision.HIGHEST

    def conv3(x, w, b):
        y = lax.conv_general_dilated(x, w, (1, 1), ((1, 1), (1, 1)),
                                     dimension_numbers=("NCHW", "OIHW", "NCHW"),
                                     precision=prec)
        return y + b[None, :, None, None]

    def inorm(v):
        m = jnp.mean(v, axis=(2, 3), keepdims=True)
        var = jnp.mean((v - m) ** 2, axis=(2, 3), keepdims=True)
        return (v - m) / jnp.sqrt(var + EPS_NORM)

    def block(v, cb):
        v = jnp.maximum(inorm(conv3(v, cb["w1"], cb["b1"])), 0.0)
        v = jnp.maximum(inorm(conv3(v, cb["w2"], cb["b2"])), 0.0)
        return v

    def pool(v):
        b, c, h, w = v.shape
        return jnp.max(v.reshape(b, c, h // 2, 2, w // 2, 2), axis=(3, 5))

    def deconv(v, w, bias):
        y = jnp.einsum("bchw,cokl->bohkwl", v, w, precision=prec)
        b_, co, hh, _, ww, _ = y.shape
        return y.reshape(b_, co, 2 * hh, 2 * ww) + bias[None, :, None, None]

    h = x
    h = block(h, params["enc_cb1"]); h = pool(h)
    h = block(h, params["enc_cb2"]); h = pool(h)
    h = block(h, params["enc_cb3"]); h = pool(h)
    enc = h.reshape(B, -1) @ params["enc_fc_w"].T + params["enc_fc_b"]
    mu, logvar = enc[:, :BOT], enc[:, BOT:]
    z = mu + jnp.exp(0.5 * logvar) * eps
    d = (z @ params["dec_fc_w"].T + params["dec_fc_b"]).reshape(B, C3, 2, 2)
    d = deconv(d, params["dec_up1"]["w"], params["dec_up1"]["b"])
    d = block(d, params["dec_cb1"])
    d = deconv(d, params["dec_up2"]["w"], params["dec_up2"]["b"])
    d = block(d, params["dec_cb2"])
    d = deconv(d, params["dec_up3"]["w"], params["dec_up3"]["b"])
    out = jnp.einsum("bchw,oc->bohw", d,
                     params["out_w"].reshape(OUT_CH, FEATURE_MAPS),
                     precision=prec) + params["out_b"][None, :, None, None]
    return out, mu, logvar, z


# TODO(synk): train_epoch/test_epoch/train_net + TensorBoard logging are host-side training
# utilities and out of scope; the reparametrisation noise is passed in explicitly (torch's
# in-module RNG has no Pallas equivalent).

# ---------------------------------- main --------------------------------------
if __name__ == "__main__":
    key = jax.random.PRNGKey(0)
    k_param, k_x, k_eps = jax.random.split(key, 3)
    params = init_params(k_param)
    packed = pack_kernel_inputs(params)

    x = jax.random.normal(k_x, (B, IN_CH, H_IN, W_IN), dtype=jnp.float32)
    eps = jax.random.normal(k_eps, (B, BOT), dtype=jnp.float32)

    roll_like_jnp = detect_roll_like_jnp()
    forward = make_forward(roll_like_jnp)

    out, mu, logvar, z = forward(packed, x, eps)
    jax.block_until_ready(out)

    assert out.shape == (B, OUT_CH, H_IN, W_IN)
    assert mu.shape == (B, BOT) and logvar.shape == (B, BOT) and z.shape == (B, BOT)
    assert bool(jnp.all(jnp.isfinite(out))) and bool(jnp.all(jnp.isfinite(z)))

    # Loose-tolerance check vs. a pure-JAX f32 reference (kernel matmuls run bf16 operands).
    ref_out, ref_mu, ref_logvar, ref_z = reference_forward(params, x, eps)
    tol_out = 0.15 * float(jnp.max(jnp.abs(ref_out))) + 0.03
    assert float(jnp.max(jnp.abs(out - ref_out))) < tol_out
    for a, b in ((mu, ref_mu), (logvar, ref_logvar), (z, ref_z)):
        assert float(jnp.max(jnp.abs(a - b))) < 0.1

    print("KERNEL_OK")
</pallas_src>

<mosaic_0001>
module attributes {stable_mosaic.version = 11 : i64} {
  func.func @_roll_probe_kernel(%arg0: memref<8x128xf32, #tpu.memory_space<vmem>>, %arg1: memref<8x128xf32, #tpu.memory_space<vmem>>) attributes {dimension_semantics = [], scalar_prefetch = 0 : i64, scratch_operands = 0 : i64, tpu.core_type = #tpu.core_type<tc>} {
    %c0 = arith.constant 0 : index
    %c0_0 = arith.constant 0 : index
    %0 = vector.load %arg0[%c0, %c0_0] : memref<8x128xf32, #tpu.memory_space<vmem>>, vector<8x128xf32>
    %c1_i32 = arith.constant 1 : i32
    %1 = tpu.dynamic_rotate %0 by %c1_i32 dim 1 : vector<8x128xf32>, i32 -> vector<8x128xf32>
    %c0_1 = arith.constant 0 : index
    %c0_2 = arith.constant 0 : index
    %2 = vector.load %arg1[%c0_1, %c0_2] : memref<8x128xf32, #tpu.memory_space<vmem>>, vector<8x128xf32>
    tpu.vector_store %arg1[%c0_1, %c0_2], %1 {strides = array<i32>} : memref<8x128xf32, #tpu.memory_space<vmem>>, vector<8x128xf32>,
    return
  }
}

</mosaic_0001>

<llo_original>
// kernel: tpu_custom_call.1
$region0: #{tpu_custom_call.1}
  #allocation0 [shape = 'u32[]', space=smem, size = 0x4, offset = 0x4, fixed_abs, tag = 'smem constant byte address 0x4 - core index']
  #allocation1 [shape = 'u32[144,128]{1,0:T(1,128)}', space=vmem, size = 0x12000, scoped, tag = 'internal scratch']
  %s0 = inlined_call_operand.hbm [shape: f32[8,128], index: 0, kind: input, shape index: {}]
  %s1 = inlined_call_operand.hbm [shape: f32[8,128], index: 1, kind: output, shape index: {}]
  %s2 = sld [smem:[#allocation0]]
  $region18: #{tpu_custom_call.1} parent=0
    _
  %s4 = ssub.s32 1, %s2
  %s5 = scalar_select 0, %s4, %s2
  $region1: #{tpu_custom_call.1} parent=0
    #allocation2 [shape = 'u8[4096]{0}', space=vmem, size = 0x1000, scoped, tag = 'input window, operand 0, single buffered']
    #allocation3 [shape = 's32[1]{0}', space=sflag, size = 0x4, scoped, tag = 'scoped memory for tpu_custom_call.1']
    #allocation4 [shape = 's32[1]{0}', space=sflag, size = 0x4, scoped, tag = 'scoped memory for tpu_custom_call.1']
    #allocation5 [shape = 'u8[4096]{0}', space=vmem, size = 0x1000, scoped, tag = 'output window, operand 0, single buffered']
    %6 = vsyncpa [#allocation3], 0
    %7 = vsyncpa [#allocation4], 0
    // Predicated region
    $region2: #{tpu_custom_call.1} parent=1 // pred_check
      _
    $region3: #{tpu_custom_call.1} parent=1 // pred_check_branch
      %9 = sbr.rel (0) target = $region5
    $region4: #{tpu_custom_call.1} parent=1 // pred_region
      %s11 = ssub.s32 128, 128
      %12 = vsyncadd [#allocation3], %s11
      %s14 = sshll.u32 [#allocation2], 4
      %s15 = int_to_ptr.vmem [resolvable:$true] %s14
      %17 = dma.hbm_to_vmem [thread:$0]  %s0, 128, %s15, [#allocation3]
    $region5: #{tpu_custom_call.1} parent=1 // pred_fallthru
      _
    // Predicated region
    $region6: #{tpu_custom_call.1} parent=1 // pred_check
      _
    $region7: #{tpu_custom_call.1} parent=1 // pred_check_branch
      %19 = sbr.rel (0) target = $region9
    $region8: #{tpu_custom_call.1} parent=1 // pred_region
      %20 = dma.done [#allocation3], 128
    $region9: #{tpu_custom_call.1} parent=1 // pred_fallthru
      _
    %v21 = vld [vmem:[#allocation2] sm:$0xff]
    %22 = vrot.lane.b32.xlu0 %v21, 1
    %v23 = vpop.permute.xlu0 %22
    %24 = vst [vmem:[#allocation5] sm:$0xff] %v23
    // Predicated region
    $region10: #{tpu_custom_call.1} parent=1 // pred_check
      _
    $region11: #{tpu_custom_call.1} parent=1 // pred_check_branch
      %26 = sbr.rel (0) target = $region13
    $region12: #{tpu_custom_call.1} parent=1 // pred_region
      %s28 = ssub.s32 128, 128
      %29 = vsyncadd [#allocation4], %s28
      %s31 = sshll.u32 [#allocation5], 4
      %s32 = int_to_ptr.vmem [resolvable:$true] %s31
      %34 = dma.vmem_to_hbm [thread:$0]  %s32, 128, %s1, [#allocation4]
    $region13: #{tpu_custom_call.1} parent=1 // pred_fallthru
      _
    // Predicated region
    $region14: #{tpu_custom_call.1} parent=1 // pred_check
      _
    $region15: #{tpu_custom_call.1} parent=1 // pred_check_branch
      %36 = sbr.rel (0) target = $region17
    $region16: #{tpu_custom_call.1} parent=1 // pred_region
      %37 = dma.done [#allocation4], 128
    $region17: #{tpu_custom_call.1} parent=1 // pred_fallthru
      _
    %38 = vsyncpa [#allocation3], 1
    %39 = vsyncpa [#allocation4], 1

</llo_original>
